<compile_context>
chip_gen: v5e
topology: v5e:2x2
jax: 0.10.0
libtpu: 0.0.40
codegen_flags: <defaults>
</compile_context>

<pallas_src>
import functools

import jax
import jax.numpy as jnp
from jax.experimental import pallas as pl
from jax.experimental.pallas import tpu as pltpu

_LANE = 128
_SUBLANE = 8


def _cdiv(a, b):
    return -(-a // b)


def _round_up(x, m):
    return _cdiv(x, m) * m


def _largest_divisor_leq(n, cap):
    cap = max(1, min(n, cap))
    for d in range(cap, 0, -1):
        if n % d == 0:
            return d
    return 1


def _vmem_capacity_bytes():
    """Physical VMEM per TensorCore; falls back to the smallest gen (v7x)."""
    try:
        info = pltpu.get_tpu_info()
        for name in ("vmem_capacity_bytes", "vmem_bytes"):
            cap = getattr(info, name, None)
            if cap:
                return int(cap)
    except Exception:
        pass
    return 64 * 1024 * 1024


def _sum_last2(v):
    # lane reduce first, then sublane reduce (keepdims) -> (Nb, 1, 1)
    return jnp.sum(jnp.sum(v, axis=2, keepdims=True), axis=1, keepdims=True)


# ---------------- single-pass fused kernel (whole sample(s) per grid step) ---

def _gn1_fused_kernel(x_ref, gamma_ref, beta_ref, o_ref, *, n_elem, eps):
    # x_ref: (nb, C, HW) with gamma/beta (1, C, 1), OR
    #        (nb, R, 128) with per-element gamma/beta rows (R, 128).
    x = x_ref[...].astype(jnp.float32)
    inv_n = 1.0 / n_elem
    mean = _sum_last2(x) * inv_n                      # (nb, 1, 1)
    ex2 = _sum_last2(x * x) * inv_n                   # (nb, 1, 1)
    var = jnp.maximum(ex2 - mean * mean, 0.0)
    rstd = jax.lax.rsqrt(var + eps)
    scale = gamma_ref[...] * rstd                     # broadcast to block shape
    shift = beta_ref[...] - mean * scale
    o_ref[...] = (x * scale + shift).astype(o_ref.dtype)


# ---------------- large-sample path: HW tiled, two-phase ---------------------

def _gn1_stats_kernel(x_ref, gamma_ref, beta_ref, scale_ref, shift_ref,
                      sum_acc, sq_acc, *, hw, chunk, n_elem, eps):
    k = pl.program_id(1)

    @pl.when(k == 0)
    def _():
        sum_acc[...] = jnp.zeros_like(sum_acc)
        sq_acc[...] = jnp.zeros_like(sq_acc)

    x = x_ref[...].astype(jnp.float32)                # (1, C, T)
    # Mask the (possibly partial) last chunk: OOB lanes hold unspecified data.
    col = chunk * k + jax.lax.broadcasted_iota(jnp.int32, x.shape, 2)
    x = jnp.where(col < hw, x, 0.0)
    # Per-channel lane-reduced partials; sublane reduce + rsqrt deferred to the
    # last chunk (keeps per-chunk XLU work minimal).
    sum_acc[...] += jnp.sum(x, axis=2, keepdims=True)         # (1, C, 1)
    sq_acc[...] += jnp.sum(x * x, axis=2, keepdims=True)

    @pl.when(k == pl.num_programs(1) - 1)
    def _():
        inv_n = 1.0 / n_elem
        mean = jnp.sum(sum_acc[...]) * inv_n
        var = jnp.maximum(jnp.sum(sq_acc[...]) * inv_n - mean * mean, 0.0)
        rstd = jax.lax.rsqrt(var + eps)
        scale = gamma_ref[...] * rstd                 # (1, C, 1)
        shift = beta_ref[...] - mean * scale
        scale_ref[...] = scale
        shift_ref[...] = shift


def _gn1_normalize_kernel(x_ref, scale_ref, shift_ref, o_ref):
    x = x_ref[...].astype(jnp.float32)
    o_ref[...] = (x * scale_ref[...] + shift_ref[...]).astype(o_ref.dtype)


# ---------------- wrapper -----------------------------------------------------

def group_norm1_pallas(x_nchw, gamma, beta, eps=1e-5,
                       block_budget_bytes=None,
                       single_pass_max_bytes=None):
    """GroupNorm(num_groups=1, num_channels=C) on an NCHW tensor (Pallas TPU)."""
    N, C, H, W = x_nchw.shape
    HW = H * W
    n_elem = C * HW
    in_size = jnp.dtype(x_nchw.dtype).itemsize
    out_size = in_size

    vmem_cap = _vmem_capacity_bytes()
    vmem_limit = min((3 * vmem_cap) // 4, 100 * 1024 * 1024)
    if block_budget_bytes is None:
        block_budget_bytes = vmem_cap // 8            # ~8 MiB v7x, ~16 MiB v5e/v6e
    if single_pass_max_bytes is None:
        single_pass_max_bytes = (vmem_limit * 4) // 5

    # Per-element live bytes for the fused kernel: double-buffered in + out
    # plus ~8 B of f32 temporaries (accounts for bf16 -> f32 upcast).
    fused_elem_bytes = 2 * in_size + 2 * out_size + 8
    per_sample_fused = n_elem * fused_elem_bytes

    gamma32 = gamma.astype(jnp.float32)
    beta32 = beta.astype(jnp.float32)

    if per_sample_fused <= single_pass_max_bytes:
        # ------------------- single-pass fused path -------------------------
        flat_affine_bytes = 2 * 2 * n_elem * 4        # dbl-buffered g/b rows
        use_flat = ((n_elem % _LANE == 0) and (C % _SUBLANE != 0)
                    and per_sample_fused + flat_affine_bytes <= single_pass_max_bytes)
        if use_flat:
            # Dense sublane packing for small C: (N, C*HW/128, 128).
            R = n_elem // _LANE
            x = x_nchw.reshape(N, R, _LANE)           # free reshape
            g = jnp.broadcast_to(gamma32[:, None], (C, HW)).reshape(R, _LANE)
            b = jnp.broadcast_to(beta32[:, None], (C, HW)).reshape(R, _LANE)
            gb_block, gb_map = (R, _LANE), (lambda i: (0, 0))
            x_block = lambda nb_: (nb_, R, _LANE)
            affine_bytes = flat_affine_bytes
        else:
            x = x_nchw.reshape(N, C, HW)              # free reshape
            g = gamma32.reshape(1, C, 1)
            b = beta32.reshape(1, C, 1)
            gb_block, gb_map = (1, C, 1), (lambda i: (0, 0, 0))
            x_block = lambda nb_: (nb_, C, HW)
            affine_bytes = 0

        # Keep the grid at >= min(N, 4) steps (megacore + double buffering),
        # and fit samples-per-step to the block budget.
        nb_cap_steps = max(1, N // min(N, 4))
        nb_cap_budget = max(1, (block_budget_bytes - affine_bytes)
                            // max(per_sample_fused, 1))
        nb = _largest_divisor_leq(N, min(nb_cap_steps, nb_cap_budget))

        out = pl.pallas_call(
            functools.partial(_gn1_fused_kernel, n_elem=n_elem, eps=eps),
            out_shape=jax.ShapeDtypeStruct(x.shape, x_nchw.dtype),
            grid=(N // nb,),
            in_specs=[
                pl.BlockSpec(x_block(nb), lambda i: (i, 0, 0)),
                pl.BlockSpec(gb_block, gb_map),
                pl.BlockSpec(gb_block, gb_map),
            ],
            out_specs=pl.BlockSpec(x_block(nb), lambda i: (i, 0, 0)),
            compiler_params=pltpu.CompilerParams(
                dimension_semantics=("parallel",),
                vmem_limit_bytes=vmem_limit),
        )(x, g, b)
        return out.reshape(N, C, H, W)

    # ------------------- tiled two-phase path --------------------------------
    x = x_nchw.reshape(N, C, HW)                      # free reshape
    g = gamma32.reshape(1, C, 1)
    b = beta32.reshape(1, C, 1)

    # Chunk size: multiple of 128 sized to the block budget, then tightened so
    # K * T only just covers HW (no wrapper-side padding; the partial last
    # chunk is masked in-kernel and its stores are dropped by the pipeline).
    t_target = max(_LANE,
                   (block_budget_bytes // max(C * fused_elem_bytes, 1))
                   // _LANE * _LANE)
    K = max(1, _cdiv(HW, t_target))
    T = _round_up(_cdiv(HW, K), _LANE)
    K = _cdiv(HW, T)

    # phase 1: per-sample folded scale/shift (chunk axis is a reduction)
    scale, shift = pl.pallas_call(
        functools.partial(_gn1_stats_kernel, hw=HW, chunk=T,
                          n_elem=n_elem, eps=eps),
        out_shape=(jax.ShapeDtypeStruct((N, C, 1), jnp.float32),
                   jax.ShapeDtypeStruct((N, C, 1), jnp.float32)),
        grid=(N, K),
        in_specs=[
            pl.BlockSpec((1, C, T), lambda n, k: (n, 0, k)),
            pl.BlockSpec((1, C, 1), lambda n, k: (0, 0, 0)),
            pl.BlockSpec((1, C, 1), lambda n, k: (0, 0, 0)),
        ],
        out_specs=(pl.BlockSpec((1, C, 1), lambda n, k: (n, 0, 0)),
                   pl.BlockSpec((1, C, 1), lambda n, k: (n, 0, 0))),
        scratch_shapes=[pltpu.VMEM((1, C, 1), jnp.float32),
                        pltpu.VMEM((1, C, 1), jnp.float32)],
        compiler_params=pltpu.CompilerParams(
            dimension_semantics=("parallel", "arbitrary"),
            vmem_limit_bytes=vmem_limit),
    )(x, g, b)

    # phase 2: lane-dense normalize, fully parallel over (N, chunks)
    out = pl.pallas_call(
        _gn1_normalize_kernel,
        out_shape=jax.ShapeDtypeStruct((N, C, HW), x_nchw.dtype),
        grid=(N, K),
        in_specs=[
            pl.BlockSpec((1, C, T), lambda n, k: (n, 0, k)),
            pl.BlockSpec((1, C, 1), lambda n, k: (n, 0, 0)),
            pl.BlockSpec((1, C, 1), lambda n, k: (n, 0, 0)),
        ],
        out_specs=pl.BlockSpec((1, C, T), lambda n, k: (n, 0, k)),
        compiler_params=pltpu.CompilerParams(
            dimension_semantics=("parallel", "parallel"),
            vmem_limit_bytes=vmem_limit),
    )(x, scale, shift)
    return out.reshape(N, C, H, W)


class PreNorm:
    """JAX/Pallas port of the PyTorch PreNorm module.

    forward(x) = fn(GroupNorm(1, dim)(x)), x in NCHW.
    """

    def __init__(self, dim, fn):
        self.dim = dim
        self.fn = fn
        # nn.GroupNorm default affine init: weight = ones, bias = zeros.
        self.gamma = jnp.ones((dim,), dtype=jnp.float32)
        self.beta = jnp.zeros((dim,), dtype=jnp.float32)

    def __call__(self, x):
        return self.fn(group_norm1_pallas(x, self.gamma, self.beta))


def _reference_group_norm1(x, gamma, beta, eps=1e-5):
    N, C, H, W = x.shape
    xf = x.reshape(N, -1).astype(jnp.float32)
    mean = xf.mean(axis=1, keepdims=True)
    var = ((xf - mean) ** 2).mean(axis=1, keepdims=True)
    xhat = ((xf - mean) / jnp.sqrt(var + eps)).reshape(N, C, H, W)
    out = xhat * gamma[None, :, None, None] + beta[None, :, None, None]
    return out.astype(x.dtype)


if __name__ == "__main__":
    key = jax.random.PRNGKey(0)
    k_x, k_w, k_g, k_b, k_x2, k_x3 = jax.random.split(key, 6)

    # --- main PreNorm forward (flat fused path: C=4, C*H*W % 128 == 0) -------
    N, C, H, W = 2, 4, 16, 16
    x = jax.random.normal(k_x, (N, C, H, W), dtype=jnp.float32)

    # Example `fn`: deterministic 1x1 conv over channels (typical wrapped
    # UNet sub-module), applied as JAX glue outside the norm kernel.
    w_fn = jax.random.normal(k_w, (C, C), dtype=jnp.float32) * 0.1

    def fn(y):
        return jnp.einsum("oc,nchw->nohw", w_fn, y)

    model = PreNorm(C, fn)
    out = jax.block_until_ready(model(x))
    ref = fn(_reference_group_norm1(x, model.gamma, model.beta))
    assert out.shape == (N, C, H, W)
    assert jnp.allclose(out, ref, atol=1e-4, rtol=1e-4), "PreNorm mismatch vs reference"

    # --- extra coverage: non-trivial affine ----------------------------------
    gamma = jax.random.normal(k_g, (8,), dtype=jnp.float32)
    beta = jax.random.normal(k_b, (8,), dtype=jnp.float32)

    # standard fused path with HW not a multiple of 128 (full-extent last dim,
    # no pad / no slice)
    xs = jax.random.normal(k_x2, (2, 8, 5, 7), dtype=jnp.float32)
    got = jax.block_until_ready(group_norm1_pallas(xs, gamma, beta))
    assert jnp.allclose(got, _reference_group_norm1(xs, gamma, beta),
                        atol=1e-4, rtol=1e-4), "small-path mismatch"

    # tiled two-phase path (forced with tiny budgets), HW=130 -> partial chunk
    xt = jax.random.normal(k_x3, (2, 8, 10, 13), dtype=jnp.float32)
    got = jax.block_until_ready(
        group_norm1_pallas(xt, gamma, beta,
                           block_budget_bytes=4096, single_pass_max_bytes=4096))
    assert jnp.allclose(got, _reference_group_norm1(xt, gamma, beta),
                        atol=1e-4, rtol=1e-4), "tiled-path mismatch"

    print("KERNEL_OK")
</pallas_src>

<mosaic_0001>
module attributes {stable_mosaic.version = 11 : i64} {
  func.func @_gn1_fused_kernel(%arg0: i32, %arg1: memref<1x8x128xf32, #tpu.memory_space<vmem>>, %arg2: memref<8x128xf32, #tpu.memory_space<vmem>>, %arg3: memref<8x128xf32, #tpu.memory_space<vmem>>, %arg4: memref<1x8x128xf32, #tpu.memory_space<vmem>>) attributes {dimension_semantics = [#tpu.dimension_semantics<parallel>], iteration_bounds = array<i64: 2>, scalar_prefetch = 0 : i64, scratch_operands = 0 : i64, tpu.core_type = #tpu.core_type<tc>, window_params = [{transform_indices = @transform_0, window_bounds = array<i64: 1, 8, 128>}, {pipeline_mode = #tpu.pipeline_mode<synchronous>, transform_indices = @transform_1, window_bounds = array<i64: 8, 128>}, {pipeline_mode = #tpu.pipeline_mode<synchronous>, transform_indices = @transform_2, window_bounds = array<i64: 8, 128>}, {transform_indices = @transform_3, window_bounds = array<i64: 1, 8, 128>}]} {
    %c0 = arith.constant 0 : index
    %c0_0 = arith.constant 0 : index
    %c0_1 = arith.constant 0 : index
    %0 = vector.load %arg1[%c0, %c0_0, %c0_1] : memref<1x8x128xf32, #tpu.memory_space<vmem>>, vector<1x8x128xf32>
    %cst = arith.constant dense<0.000000e+00> : vector<1x8xf32>
    %1 = vector.multi_reduction <add>, %0, %cst [2] : vector<1x8x128xf32> to vector<1x8xf32>
    %2 = vector.shape_cast %1 : vector<1x8xf32> to vector<1x8x1xf32>
    %cst_2 = arith.constant dense<0.000000e+00> : vector<1x1xf32>
    %3 = vector.multi_reduction <add>, %2, %cst_2 [1] : vector<1x8x1xf32> to vector<1x1xf32>
    %4 = vector.shape_cast %3 : vector<1x1xf32> to vector<1x1x1xf32>
    %cst_3 = arith.constant 9.765625E-4 : f32
    %5 = vector.broadcast %cst_3 : f32 to vector<1x1x1xf32>
    %6 = arith.mulf %4, %5 : vector<1x1x1xf32>
    %7 = arith.mulf %0, %0 : vector<1x8x128xf32>
    %cst_4 = arith.constant dense<0.000000e+00> : vector<1x8xf32>
    %8 = vector.multi_reduction <add>, %7, %cst_4 [2] : vector<1x8x128xf32> to vector<1x8xf32>
    %9 = vector.shape_cast %8 : vector<1x8xf32> to vector<1x8x1xf32>
    %cst_5 = arith.constant dense<0.000000e+00> : vector<1x1xf32>
    %10 = vector.multi_reduction <add>, %9, %cst_5 [1] : vector<1x8x1xf32> to vector<1x1xf32>
    %11 = vector.shape_cast %10 : vector<1x1xf32> to vector<1x1x1xf32>
    %cst_6 = arith.constant 9.765625E-4 : f32
    %12 = vector.broadcast %cst_6 : f32 to vector<1x1x1xf32>
    %13 = arith.mulf %11, %12 : vector<1x1x1xf32>
    %14 = arith.mulf %6, %6 : vector<1x1x1xf32>
    %15 = arith.subf %13, %14 : vector<1x1x1xf32>
    %cst_7 = arith.constant 0.000000e+00 : f32
    %16 = vector.broadcast %cst_7 : f32 to vector<1x1x1xf32>
    %17 = arith.maximumf %15, %16 : vector<1x1x1xf32>
    %cst_8 = arith.constant 9.99999974E-6 : f32
    %18 = vector.broadcast %cst_8 : f32 to vector<1x1x1xf32>
    %19 = arith.addf %17, %18 : vector<1x1x1xf32>
    %20 = math.rsqrt %19 : vector<1x1x1xf32>
    %c0_9 = arith.constant 0 : index
    %c0_10 = arith.constant 0 : index
    %21 = vector.load %arg2[%c0_9, %c0_10] : memref<8x128xf32, #tpu.memory_space<vmem>>, vector<8x128xf32>
    %22 = vector.shape_cast %21 : vector<8x128xf32> to vector<1x8x128xf32>
    %23 = vector.broadcast %20 : vector<1x1x1xf32> to vector<1x8x128xf32>
    %24 = arith.mulf %22, %23 : vector<1x8x128xf32>
    %c0_11 = arith.constant 0 : index
    %c0_12 = arith.constant 0 : index
    %25 = vector.load %arg3[%c0_11, %c0_12] : memref<8x128xf32, #tpu.memory_space<vmem>>, vector<8x128xf32>
    %26 = vector.broadcast %6 : vector<1x1x1xf32> to vector<1x8x128xf32>
    %27 = arith.mulf %26, %24 : vector<1x8x128xf32>
    %28 = vector.shape_cast %25 : vector<8x128xf32> to vector<1x8x128xf32>
    %29 = arith.subf %28, %27 : vector<1x8x128xf32>
    %30 = arith.mulf %0, %24 : vector<1x8x128xf32>
    %31 = arith.addf %30, %29 : vector<1x8x128xf32>
    %c0_13 = arith.constant 0 : index
    %c0_14 = arith.constant 0 : index
    %c0_15 = arith.constant 0 : index
    %32 = vector.load %arg4[%c0_13, %c0_14, %c0_15] : memref<1x8x128xf32, #tpu.memory_space<vmem>>, vector<1x8x128xf32>
    tpu.vector_store %arg4[%c0_13, %c0_14, %c0_15], %31 {strides = array<i32>} : memref<1x8x128xf32, #tpu.memory_space<vmem>>, vector<1x8x128xf32>,
    return
  }
  func.func @transform_0(%arg0: i32) -> (i32, i32, i32) {
    %c0_i32 = arith.constant 0 : i32
    %c0_i32_0 = arith.constant 0 : i32
    %c0_i32_1 = arith.constant 0 : i32
    return %arg0, %c0_i32, %c0_i32_0 : i32, i32, i32
  }
  func.func @transform_1(%arg0: i32) -> (i32, i32) {
    %c0_i32 = arith.constant 0 : i32
    %c0_i32_0 = arith.constant 0 : i32
    %c0_i32_1 = arith.constant 0 : i32
    return %c0_i32, %c0_i32_0 : i32, i32
  }
  func.func @transform_2(%arg0: i32) -> (i32, i32) {
    %c0_i32 = arith.constant 0 : i32
    %c0_i32_0 = arith.constant 0 : i32
    %c0_i32_1 = arith.constant 0 : i32
    return %c0_i32, %c0_i32_0 : i32, i32
  }
  func.func @transform_3(%arg0: i32) -> (i32, i32, i32) {
    %c0_i32 = arith.constant 0 : i32
    %c0_i32_0 = arith.constant 0 : i32
    %c0_i32_1 = arith.constant 0 : i32
    return %arg0, %c0_i32, %c0_i32_0 : i32, i32, i32
  }
}

</mosaic_0001>

<llo_original>
// kernel: tpu_custom_call.1
$region0: #{tpu_custom_call.1}
  #allocation0 [shape = 'u32[]', space=smem, size = 0x4, offset = 0x4, fixed_abs, tag = 'smem constant byte address 0x4 - core index']
  #allocation1 [shape = 'u32[72,128]{1,0:T(1,128)}', space=vmem, size = 0x9000, scoped, tag = 'internal scratch']
  %s0 = inlined_call_operand.hbm [shape: f32[2,8,128], index: 0, kind: input, shape index: {}]
  %s1 = inlined_call_operand.hbm [shape: f32[8,128], index: 1, kind: input, shape index: {}]
  %s2 = inlined_call_operand.hbm [shape: f32[8,128], index: 2, kind: input, shape index: {}]
  %s3 = inlined_call_operand.hbm [shape: f32[2,8,128], index: 3, kind: output, shape index: {}]
  %s4 = sld [smem:[#allocation0]]
  $region57: #{tpu_custom_call.1} parent=0
    _
  %s6 = ssub.s32 1, %s4
  %s7 = scalar_select 0, %s6, %s4
  $region1: #{tpu_custom_call.1} parent=0
    #allocation2 [shape = 'u8[8192]{0}', space=vmem, size = 0x2000, scoped, tag = 'input window, operand 0']
    #allocation3 [shape = 's32[2]{0}', space=sflag, size = 0x8, scoped, tag = 'scoped memory for tpu_custom_call.1']
    #allocation4 [shape = 's32[2]{0}', space=sflag, size = 0x8, scoped, tag = 'scoped memory for tpu_custom_call.1']
    #allocation5 [shape = 'u8[4096]{0}', space=vmem, size = 0x1000, scoped, tag = 'input window, operand 1, single buffered']
    #allocation6 [shape = 's32[1]{0}', space=sflag, size = 0x4, scoped, tag = 'scoped memory for tpu_custom_call.1']
    #allocation7 [shape = 'u8[4096]{0}', space=vmem, size = 0x1000, scoped, tag = 'input window, operand 2, single buffered']
    #allocation8 [shape = 'u8[8192]{0}', space=vmem, size = 0x2000, scoped, tag = 'output window, operand 0']
    %8 = vsyncpa [#allocation3], 0
    %s9 = scalar_lea.sflag [#allocation3], 1
    %10 = vsyncpa %s9, 0
    %11 = vsyncpa [#allocation6], 0
    %12 = vsyncpa [#allocation4], 0
    %s13 = scalar_lea.sflag [#allocation4], 1
    %14 = vsyncpa %s13, 0
    loop: start=0, step=1, limit=4
    $region2: #{tpu_custom_call.1} parent=1 // loop_pre_header
      _
    $region3: #{tpu_custom_call.1} parent=1 // loop_header
      %s16 = sphi 0, %s20
      %p17 = scmp.ge.s32.totalorder %s16, 4
      %s26 = sphi 0, %s28
      %s29 = sphi 0, %s26
      %s30 = sphi 0, %s29
      %s46 = sphi 0, %s30
      %s50 = sphi 0, %s50
      %s52 = sphi 0, %s50
      %s53 = sphi 0, %s52
      %s67 = sphi 0, %s53
      %s71 = sphi 0, %s71
      %s73 = sphi 0, %s71
      %s74 = sphi 0, %s73
      %s88 = sphi 0, %s74
      %s94 = sphi 0, %s96
      %s97 = sphi 0, %s94
      %s98 = sphi 0, %s97
      %s114 = sphi 0, %s98
    $region4: #{tpu_custom_call.1} parent=1 // loop_header_branch
      %19 = sbr.rel (%p17) target = $region8
    $region5: #{tpu_custom_call.1} parent=1 // loop_body
      %s21 = ssub.s32 %s16, 1
      %s22 = ssub.s32 %s16, 2
      %s23 = sadd.s32 %s16, 1
      %s24 = ssub.s32 %s16, %s23
      %p25 = scmp.eq.s32.totalorder %s24, 0
      %s27 = sadd.s32 %s26, 1
      %s28 = scalar_select %p25, %s26, %s27
      %p31 = pneg %p25
      %p32 = scmp.eq.s32.totalorder %s16, 1
      %p33 = por %p31, %p32
      %p34 = scmp.ne.s32.totalorder %s26, %s29
      %p35 = scmp.eq.s32.totalorder %s16, 0
      %p36 = por %p34, %p35
      %p37 = scmp.ne.s32.totalorder %s26, %s29
      %p38 = scmp.eq.s32.totalorder %s21, 1
      %p39 = por %p37, %p38
      %p40 = scmp.ne.s32.totalorder %s29, %s30
      %p41 = scmp.eq.s32.totalorder %s21, 0
      %p42 = por %p40, %p41
      %p43 = scmp.ne.s32.totalorder %s29, %s30
      %p44 = scmp.eq.s32.totalorder %s22, 1
      %p45 = por %p43, %p44
      %p47 = scmp.ne.s32.totalorder %s30, %s46
      %p48 = scmp.eq.s32.totalorder %s22, 0
      %p49 = por %p47, %p48
      %s51 = sadd.s32 %s50, 1
      %p54 = scmp.eq.s32.totalorder %s16, 1
      %p55 = scmp.ne.s32.totalorder %s50, %s52
      %p56 = scmp.eq.s32.totalorder %s16, 0
      %p57 = por %p55, %p56
      %p58 = scmp.ne.s32.totalorder %s50, %s52
      %p59 = scmp.eq.s32.totalorder %s21, 1
      %p60 = por %p58, %p59
      %p61 = scmp.ne.s32.totalorder %s52, %s53
      %p62 = scmp.eq.s32.totalorder %s21, 0
      %p63 = por %p61, %p62
      %p64 = scmp.ne.s32.totalorder %s52, %s53
      %p65 = scmp.eq.s32.totalorder %s22, 1
      %p66 = por %p64, %p65
      %p68 = scmp.ne.s32.totalorder %s53, %s67
      %p69 = scmp.eq.s32.totalorder %s22, 0
      %p70 = por %p68, %p69
      %s72 = sadd.s32 %s71, 1
      %p75 = scmp.eq.s32.totalorder %s16, 1
      %p76 = scmp.ne.s32.totalorder %s71, %s73
      %p77 = scmp.eq.s32.totalorder %s16, 0
      %p78 = por %p76, %p77
      %p79 = scmp.ne.s32.totalorder %s71, %s73
      %p80 = scmp.eq.s32.totalorder %s21, 1
      %p81 = por %p79, %p80
      %p82 = scmp.ne.s32.totalorder %s73, %s74
      %p83 = scmp.eq.s32.totalorder %s21, 0
      %p84 = por %p82, %p83
      %p85 = scmp.ne.s32.totalorder %s73, %s74
      %p86 = scmp.eq.s32.totalorder %s22, 1
      %p87 = por %p85, %p86
      %p89 = scmp.ne.s32.totalorder %s74, %s88
      %p90 = scmp.eq.s32.totalorder %s22, 0
      %p91 = por %p89, %p90
      %s92 = ssub.s32 %s16, %s23
      %p93 = scmp.eq.s32.totalorder %s92, 0
      %s95 = sadd.s32 %s94, 1
      %s96 = scalar_select %p93, %s94, %s95
      %p99 = pneg %p93
      %p100 = scmp.eq.s32.totalorder %s16, 1
      %p101 = por %p99, %p100
      %p102 = scmp.ne.s32.totalorder %s94, %s97
      %p103 = scmp.eq.s32.totalorder %s16, 0
      %p104 = por %p102, %p103
      %p105 = scmp.ne.s32.totalorder %s94, %s97
      %p106 = scmp.eq.s32.totalorder %s21, 1
      %p107 = por %p105, %p106
      %p108 = scmp.ne.s32.totalorder %s97, %s98
      %p109 = scmp.eq.s32.totalorder %s21, 0
      %p110 = por %p108, %p109
      %p111 = scmp.ne.s32.totalorder %s97, %s98
      %p112 = scmp.eq.s32.totalorder %s22, 1
      %p113 = por %p111, %p112
      %p115 = scmp.ne.s32.totalorder %s98, %s114
      %p116 = scmp.eq.s32.totalorder %s22, 0
      %p117 = por %p115, %p116
      %p118 = scmp.le.s32.totalorder 1, %s16
      %p119 = scmp.lt.s32.totalorder %s16, 3
      %p120 = pnand %p118, %p119
      %p121 = pneg %p120
      // Predicated region
      $region9: #{tpu_custom_call.1} parent=5 // pred_check
        _
      $region10: #{tpu_custom_call.1} parent=5 // pred_check_branch
        %123 = sbr.rel (%p120) target = $region12
      $region11: #{tpu_custom_call.1} parent=5 // pred_region
        %s124 = ssub.s32 %s16, 1
        // Predicated region
        $region13: #{tpu_custom_call.1} parent=11 // pred_check
          %p125 = pneg %p63
        $region14: #{tpu_custom_call.1} parent=11 // pred_check_branch
          %127 = sbr.rel (%p125) target = $region16
        $region15: #{tpu_custom_call.1} parent=11 // pred_region
          %129 = vsyncadd [#allocation6], 0
          %s131 = sshll.u32 %s1, 4
          %s132 = int_to_ptr.hbm [resolvable:$true] %s131
          %s133 = sshll.u32 [#allocation5], 4
          %s134 = int_to_ptr.vmem [resolvable:$true] %s133
          %136 = dma.hbm_to_vmem [thread:$0]  %s132, 128, %s134, [#allocation6]
        $region16: #{tpu_custom_call.1} parent=11 // pred_fallthru
          _
        // Predicated region
        $region17: #{tpu_custom_call.1} parent=11 // pred_check
          %p137 = pneg %p84
        $region18: #{tpu_custom_call.1} parent=11 // pred_check_branch
          %139 = sbr.rel (%p137) target = $region20
        $region19: #{tpu_custom_call.1} parent=11 // pred_region
          %141 = vsyncadd [#allocation6], 0
          %s143 = sshll.u32 %s2, 4
          %s144 = int_to_ptr.hbm [resolvable:$true] %s143
          %s145 = sshll.u32 [#allocation7], 4
          %s146 = int_to_ptr.vmem [resolvable:$true] %s145
          %148 = dma.hbm_to_vmem [thread:$0]  %s144, 128, %s146, [#allocation6]
        $region20: #{tpu_custom_call.1} parent=11 // pred_fallthru
          _
      $region12: #{tpu_custom_call.1} parent=5 // pred_fallthru
        _
      %p149 = scmp.lt.s32.totalorder %s16, 2
      // Predicated region
      $region21: #{tpu_custom_call.1} parent=5 // pred_check
        %p150 = pneg %p149
      $region22: #{tpu_custom_call.1} parent=5 // pred_check_branch
        %152 = sbr.rel (%p150) target = $region24
      $region23: #{tpu_custom_call.1} parent=5 // pred_region
        // Predicated region
        $region25: #{tpu_custom_call.1} parent=23 // pred_check
          %p153 = pneg %p36
        $region26: #{tpu_custom_call.1} parent=23 // pred_check_branch
          %155 = sbr.rel (%p153) target = $region28
        $region27: #{tpu_custom_call.1} parent=23 // pred_region
          %s156 = sand.u32 %s26, 1
          %s157 = scalar_lea.sflag [#allocation3], %s156
          %s158 = sand.u32 %s26, 1
          %s159 = smul.addr %s158, 8
          %s160 = scalar_lea.vmem [#allocation2], %s159
          %162 = vsyncadd %s157, 0
          %s163 = smul.addr %s16, 8
          %s164 = scalar_lea.hbm %s0, %s163
          %s166 = sshll.u32 %s164, 4
          %s167 = int_to_ptr.hbm [resolvable:$true] %s166
          %s168 = sshll.u32 %s160, 4
          %s169 = int_to_ptr.vmem [resolvable:$true] %s168
          %171 = dma.hbm_to_vmem [thread:$0]  %s167, 128, %s169, %s157
        $region28: #{tpu_custom_call.1} parent=23 // pred_fallthru
          _
      $region24: #{tpu_custom_call.1} parent=5 // pred_fallthru
        _
      %p172 = scmp.le.s32.totalorder 1, %s16
      %p173 = scmp.lt.s32.totalorder %s16, 3
      %p174 = pnand %p172, %p173
      %p175 = pneg %p174
      // Predicated region
      $region29: #{tpu_custom_call.1} parent=5 // pred_check
        _
      $region30: #{tpu_custom_call.1} parent=5 // pred_check_branch
        %177 = sbr.rel (%p174) target = $region32
      $region31: #{tpu_custom_call.1} parent=5 // pred_region
        %s178 = ssub.s32 %s16, 1
        %s179 = sand.u32 %s29, 1
        %s180 = scalar_lea.sflag [#allocation3], %s179
        %s181 = sand.u32 %s29, 1
        %s182 = smul.addr %s181, 8
        %s183 = scalar_lea.vmem [#allocation2], %s182
        // Predicated region
        $region33: #{tpu_custom_call.1} parent=31 // pred_check
          %p184 = pneg %p42
        $region34: #{tpu_custom_call.1} parent=31 // pred_check_branch
          %186 = sbr.rel (%p184) target = $region36
        $region35: #{tpu_custom_call.1} parent=31 // pred_region
          %188 = dma.done %s180, 128
        $region36: #{tpu_custom_call.1} parent=31 // pred_fallthru
          _
        // Predicated region
        $region37: #{tpu_custom_call.1} parent=31 // pred_check
          %p189 = pneg %p63
        $region38: #{tpu_custom_call.1} parent=31 // pred_check_branch
          %191 = sbr.rel (%p189) target = $region40
        $region39: #{tpu_custom_call.1} parent=31 // pred_region
          %193 = dma.done [#allocation6], 128
        $region40: #{tpu_custom_call.1} parent=31 // pred_fallthru
          _
        // Predicated region
        $region41: #{tpu_custom_call.1} parent=31 // pred_check
          %p194 = pneg %p84
        $region42: #{tpu_custom_call.1} parent=31 // pred_check_branch
          %196 = sbr.rel (%p194) target = $region44
        $region43: #{tpu_custom_call.1} parent=31 // pred_region
          %198 = dma.done [#allocation6], 128
        $region44: #{tpu_custom_call.1} parent=31 // pred_fallthru
          _
        %s199 = sand.u32 %s29, 1
        %s200 = scalar_lea.sflag [#allocation3], %s199
        %s201 = sand.u32 %s29, 1
        %s202 = smul.addr %s201, 8
        %s203 = scalar_lea.vmem [#allocation2], %s202
        %p204 = pneg %p42
        %p205 = pneg %p39
        %p206 = pneg %p63
        %p207 = pneg %p60
        %p208 = pneg %p84
        %p209 = pneg %p81
        %p210 = pneg %p110
        %p211 = pneg %p107
        %s212 = sand.u32 %s97, 1
        %s213 = scalar_lea.sflag [#allocation4], %s212
        %s214 = sand.u32 %s97, 1
        %s215 = smul.addr %s214, 8
        %s216 = scalar_lea.vmem [#allocation8], %s215
        %v217 = vld [vmem:[%s183] sm:$0xff]
        %218 = vadd.xlane.f32.xlu0 %v217
        %v219 = vpop.xlane.xlu0 %218
        %v220 = vrot.slane %v219, 4
        %v221 = vadd.f32 %v219, %v220
        %v222 = vrot.slane %v221, 2
        %v223 = vadd.f32 %v221, %v222
        %v224 = vrot.slane %v223, 1
        %v225 = vadd.f32 %v223, %v224
        %v226 = vmul.f32 %v225, 0.0009765625
        %v227 = vmul.f32 %v217, %v217
        %228 = vadd.xlane.f32.xlu0 %v227
        %v229 = vpop.xlane.xlu0 %228
        %v230 = vrot.slane %v229, 4
        %v231 = vadd.f32 %v229, %v230
        %v232 = vrot.slane %v231, 2
        %v233 = vadd.f32 %v231, %v232
        %v234 = vrot.slane %v233, 1
        %v235 = vadd.f32 %v233, %v234
        %v236 = vmul.f32 %v235, 0.0009765625
        %v237 = vmul.f32 %v226, %v226
        %v238 = vsub.f32 %v236, %v237
        %v239 = vmax.f32 %v238, 0.0
        %v240 = vadd.f32 %v239, 1e-05
        %v241 = vrsqrt.pop %v240
        %v242 = vmul.f32 %v241, %v240
        %v243 = vmul.f32 %v242, %v241
        %v244 = vmul.f32 0.5, %v243
        %v245 = vsub.f32 1.5, %v244
        %v246 = vmul.f32 %v241, %v245
        %vm247 = vweird.f32 %v240
        %vm248 = vweird.f32 %v241
        %vm249 = vmor %vm247, %vm248
        %v250 = vsel %vm249, %v241, %v246
        %v251 = vld [vmem:[#allocation5] sm:$0xff]
        %v252 = vmul.f32 %v251, %v250
        %v253 = vld [vmem:[#allocation7] sm:$0xff]
        %v254 = vmul.f32 %v226, %v252
        %v255 = vsub.f32 %v253, %v254
        %v256 = vmul.f32 %v217, %v252
        %v257 = vadd.f32 %v256, %v255
        %258 = vst [vmem:[%s216] sm:$0xff] %v257
        %s259 = sand.u32 %s97, 1
        %s260 = scalar_lea.sflag [#allocation4], %s259
        %s261 = sand.u32 %s97, 1
        %s262 = smul.addr %s261, 8
        %s263 = scalar_lea.vmem [#allocation8], %s262
        // Predicated region
        $region45: #{tpu_custom_call.1} parent=31 // pred_check
          %p264 = pneg %p107
        $region46: #{tpu_custom_call.1} parent=31 // pred_check_branch
          %266 = sbr.rel (%p264) target = $region48
        $region47: #{tpu_custom_call.1} parent=31 // pred_region
          %268 = vsyncadd %s260, 0
          %s269 = smul.addr %s21, 8
          %s270 = scalar_lea.hbm %s3, %s269
          %s272 = sshll.u32 %s263, 4
          %s273 = int_to_ptr.vmem [resolvable:$true] %s272
          %s274 = sshll.u32 %s270, 4
          %s275 = int_to_ptr.hbm [resolvable:$true] %s274
          %277 = dma.vmem_to_hbm [thread:$0]  %s273, 128, %s275, %s260
        $region48: #{tpu_custom_call.1} parent=31 // pred_fallthru
          _
      $region32: #{tpu_custom_call.1} parent=5 // pred_fallthru
        _
      %p278 = scmp.le.s32.totalorder 2, %s16
      // Predicated region
      $region49: #{tpu_custom_call.1} parent=5 // pred_check
        %p279 = pneg %p278
      $region50: #{tpu_custom_call.1} parent=5 // pred_check_branch
        %281 = sbr.rel (%p279) target = $region52
      $region51: #{tpu_custom_call.1} parent=5 // pred_region
        %s282 = ssub.s32 %s16, 2
        // Predicated region
        $region53: #{tpu_custom_call.1} parent=51 // pred_check
          %p283 = pneg %p113
        $region54: #{tpu_custom_call.1} parent=51 // pred_check_branch
          %285 = sbr.rel (%p283) target = $region56
        $region55: #{tpu_custom_call.1} parent=51 // pred_region
          %s286 = sand.u32 %s98, 1
          %s287 = scalar_lea.sflag [#allocation4], %s286
          %s288 = sand.u32 %s98, 1
          %s289 = smul.addr %s288, 8
          %s290 = scalar_lea.vmem [#allocation8], %s289
          %292 = dma.done %s287, 128
        $region56: #{tpu_custom_call.1} parent=51 // pred_fallthru
          _
      $region52: #{tpu_custom_call.1} parent=5 // pred_fallthru
        _
    $region6: #{tpu_custom_call.1} parent=1 // loop_footer
      %s20 = sadd.s32 1, %s16
    $region7: #{tpu_custom_call.1} parent=1 // loop_footer_branch
      %15 = sbr.rel target = $region3
    $region8: #{tpu_custom_call.1} parent=1 // loop_exit
      _
    %293 = vsyncpa [#allocation3], 1
    %s294 = scalar_lea.sflag [#allocation3], 1
    %295 = vsyncpa %s294, 1
    %296 = vsyncpa [#allocation6], 1
    %297 = vsyncpa [#allocation4], 1
    %s298 = scalar_lea.sflag [#allocation4], 1
    %299 = vsyncpa %s298, 1

</llo_original>
